<compile_context>
chip_gen: v7x
topology: tpu7x:2x2x1
jax: 0.10.0
libtpu: 0.0.40
codegen_flags: <defaults>
</compile_context>

<pallas_src>
import functools
import math

import jax
import jax.numpy as jnp
from jax.experimental import pallas as pl
from jax.experimental.pallas import tpu as pltpu


# ----------------------------------------------------------------------------
# Generation-aware VMEM budgeting
# ----------------------------------------------------------------------------
@functools.lru_cache(maxsize=1)
def _vmem_budget_limit():
    """Returns (working-set budget, vmem_limit_bytes, multi_core_hint)."""
    try:
        cap = int(pltpu.get_tpu_info().vmem_capacity_bytes)
    except Exception:
        cap = 64 * 1024 * 1024   # conservative default (v7x-sized)
    if cap >= 100 * 1024 * 1024:
        # 128 MiB parts (v5e / v6e): single TensorCore per chip -> take the
        # single largest tile that fits, plenty of VMEM headroom.
        return 90 * 1024 * 1024, 110 * 1024 * 1024, False
    # 64 MiB-per-core parts (v7x, 2 TCs): leave Mosaic internal-scratch
    # headroom and prefer >=2 M blocks so both cores get work.
    return 28 * 1024 * 1024, 48 * 1024 * 1024, True


def _round_up(v, m):
    return ((v + m - 1) // m) * m


def _const_spec(block_shape, index_map):
    """BlockSpec for a constant-index (fully resident) operand.

    Single-buffered (pl.Buffered(1)): the block index never changes, so
    double-buffering only wastes VMEM.  Falls back to the default pipeline
    mode if this JAX build does not expose pipeline_mode.
    """
    try:
        return pl.BlockSpec(block_shape, index_map,
                            pipeline_mode=pl.Buffered(1))
    except Exception:
        return pl.BlockSpec(block_shape, index_map)


def _pick_tm(mp, resident_bytes, per_row_bytes, budget, multi_core):
    cands = [c for c in (1024, 512, 256, 128) if mp % c == 0] or [mp]
    if multi_core:
        cands = [c for c in cands if mp // c >= 2] or cands
    for tm in cands:
        if resident_bytes + tm * per_row_bytes <= budget:
            return tm
    return cands[-1]


# ----------------------------------------------------------------------------
# Kernel 1: H = relu(X @ W + bias), padded node rows zeroed.
#   W / bias fully VMEM-resident (single-buffered), no K grid axis.
# ----------------------------------------------------------------------------
def _xw_bias_relu_kernel(x_ref, w_ref, b_ref, o_ref, *, tm, n_valid):
    acc = jnp.dot(x_ref[...], w_ref[...], preferred_element_type=jnp.float32)
    act = jnp.maximum(acc + b_ref[...], 0.0)
    if n_valid is not None:
        row = (jax.lax.broadcasted_iota(jnp.int32, act.shape, 0)
               + pl.program_id(0) * tm)
        act = jnp.where(row < n_valid, act, 0.0)
    o_ref[...] = act.astype(o_ref.dtype)


def xw_bias_relu(x, w, b, *, n_valid_rows, out_dtype):
    budget, limit, multi_core = _vmem_budget_limit()
    mp, kk = x.shape
    kk2, cp = w.shape
    assert kk == kk2
    xb, wb = x.dtype.itemsize, w.dtype.itemsize
    ob = jnp.dtype(out_dtype).itemsize

    resident = kk * cp * wb + cp * 4                # W + bias, single-buffered
    per_row = 2 * (kk * xb + cp * ob)               # X row + out row, dbl-buffered
    tm = _pick_tm(mp, resident, per_row, budget, multi_core)
    # TODO(synk): K-tiled fallback for very large in_channels (see module TODO).

    n_valid = None if n_valid_rows >= mp else n_valid_rows
    kernel = functools.partial(_xw_bias_relu_kernel, tm=tm, n_valid=n_valid)

    return pl.pallas_call(
        kernel,
        out_shape=jax.ShapeDtypeStruct((mp, cp), out_dtype),
        grid_spec=pltpu.PrefetchScalarGridSpec(
            num_scalar_prefetch=0,
            grid=(mp // tm,),
            in_specs=[
                pl.BlockSpec((tm, kk), lambda i: (i, 0)),     # X row strip
                _const_spec((kk, cp), lambda i: (0, 0)),      # W resident
                _const_spec((1, cp), lambda i: (0, 0)),       # bias resident
            ],
            out_specs=pl.BlockSpec((tm, cp), lambda i: (i, 0)),
        ),
        compiler_params=pltpu.CompilerParams(
            dimension_semantics=("parallel",),
            vmem_limit_bytes=limit),
    )(x, w, b)


# ----------------------------------------------------------------------------
# Kernel 2a (main path): fused multi-hop  H <- A @ H  with H ping-ponged in
# VMEM scratch.  grid = (hop, M); both axes sequential (hop->hop dependence).
# ----------------------------------------------------------------------------
def _fused_hops_kernel(a_ref, h0_ref, o_ref, hbuf, *, tm):
    hop = pl.program_id(0)
    m = pl.program_id(1)

    # Load the initial H into scratch slot 0 on the very first grid step.
    @pl.when((hop == 0) & (m == 0))
    def _():
        hbuf[0] = h0_ref[...]

    read_slot = hop & 1                         # 0,1,0,1,...
    h_old = hbuf[read_slot]                     # full (N, C) operand from VMEM
    result = jnp.dot(a_ref[...], h_old,
                     preferred_element_type=jnp.float32).astype(o_ref.dtype)

    start = pl.multiple_of(m * tm, tm)

    @pl.when(read_slot == 0)
    def _():
        hbuf[1, pl.ds(start, tm), :] = result

    @pl.when(read_slot == 1)
    def _():
        hbuf[0, pl.ds(start, tm), :] = result

    # Last hop's value is what ends up in HBM.
    o_ref[...] = result


def _fused_hops_call(a, h0, *, n_hops, tm, out_dtype, vmem_limit):
    mp, kp = a.shape
    _, cp = h0.shape
    kernel = functools.partial(_fused_hops_kernel, tm=tm)
    return pl.pallas_call(
        kernel,
        out_shape=jax.ShapeDtypeStruct((mp, cp), out_dtype),
        grid_spec=pltpu.PrefetchScalarGridSpec(
            num_scalar_prefetch=0,
            grid=(n_hops, mp // tm),
            in_specs=[
                pl.BlockSpec((tm, kp), lambda hp, m: (m, 0)),   # A strip, full K
                _const_spec((kp, cp), lambda hp, m: (0, 0)),    # initial H
            ],
            out_specs=pl.BlockSpec((tm, cp), lambda hp, m: (m, 0)),
            scratch_shapes=[pltpu.VMEM((2, kp, cp), out_dtype)],
        ),
        compiler_params=pltpu.CompilerParams(
            # hop->hop dependence through VMEM scratch: keep the grid sequential.
            dimension_semantics=("arbitrary", "arbitrary"),
            vmem_limit_bytes=vmem_limit),
    )(a, h0)


# ----------------------------------------------------------------------------
# Kernel 2b (fallbacks): single hop  out = A @ H.
#   - H resident:   no K grid axis, one dot per A strip.
#   - H not resident: classic K-grid with f32 accumulator.
# ----------------------------------------------------------------------------
def _adj_matmul_resident_kernel(a_ref, h_ref, o_ref):
    o_ref[...] = jnp.dot(a_ref[...], h_ref[...],
                         preferred_element_type=jnp.float32).astype(o_ref.dtype)


def _adj_matmul_kgrid_kernel(a_ref, h_ref, o_ref, acc_ref):
    @pl.when(pl.program_id(1) == 0)
    def _():
        acc_ref[...] = jnp.zeros_like(acc_ref)

    acc_ref[...] += jnp.dot(a_ref[...], h_ref[...],
                            preferred_element_type=jnp.float32)

    @pl.when(pl.program_id(1) == pl.num_programs(1) - 1)
    def _():
        o_ref[...] = acc_ref[...].astype(o_ref.dtype)


def adj_matmul(a, h, *, out_dtype):
    budget, limit, multi_core = _vmem_budget_limit()
    mp, kp = a.shape
    kp2, cp = h.shape
    assert kp == kp2
    ab, hb = a.dtype.itemsize, h.dtype.itemsize
    ob = jnp.dtype(out_dtype).itemsize

    tm_cands = [c for c in (1024, 512, 256, 128) if mp % c == 0] or [mp]
    pref = ([c for c in tm_cands if mp // c >= 2] or tm_cands) if multi_core \
        else tm_cands

    # --- resident-H path: no K grid axis, no accumulator --------------------
    h_bytes = kp * cp * hb                          # single-buffered
    for tm in pref:
        if h_bytes + 2 * tm * kp * ab + 2 * tm * cp * ob <= budget:
            return pl.pallas_call(
                _adj_matmul_resident_kernel,
                out_shape=jax.ShapeDtypeStruct((mp, cp), out_dtype),
                grid_spec=pltpu.PrefetchScalarGridSpec(
                    num_scalar_prefetch=0,
                    grid=(mp // tm,),
                    in_specs=[
                        pl.BlockSpec((tm, kp), lambda i: (i, 0)),
                        _const_spec((kp, cp), lambda i: (0, 0)),
                    ],
                    out_specs=pl.BlockSpec((tm, cp), lambda i: (i, 0)),
                ),
                compiler_params=pltpu.CompilerParams(
                    dimension_semantics=("parallel",),
                    vmem_limit_bytes=limit),
            )(a, h)

    # --- K-grid fallback: H streamed in (tk, cp) tiles, f32 accumulator -----
    tk_cands = [c for c in (2048, 1024, 512, 256, 128) if kp % c == 0] or [kp]
    tm, tk = pref[-1], tk_cands[-1]
    for cand_tm in pref:
        ok = [t for t in tk_cands
              if (2 * cand_tm * t * ab + 2 * t * cp * hb
                  + 2 * cand_tm * cp * ob + cand_tm * cp * 4) <= budget]
        if ok:
            tm, tk = cand_tm, ok[0]
            break
    return pl.pallas_call(
        _adj_matmul_kgrid_kernel,
        out_shape=jax.ShapeDtypeStruct((mp, cp), out_dtype),
        grid_spec=pltpu.PrefetchScalarGridSpec(
            num_scalar_prefetch=0,
            grid=(mp // tm, kp // tk),
            in_specs=[
                pl.BlockSpec((tm, tk), lambda i, k: (i, k)),
                pl.BlockSpec((tk, cp), lambda i, k: (k, 0)),
            ],
            out_specs=pl.BlockSpec((tm, cp), lambda i, k: (i, 0)),
            scratch_shapes=[pltpu.VMEM((tm, cp), jnp.float32)],
        ),
        compiler_params=pltpu.CompilerParams(
            dimension_semantics=("parallel", "arbitrary"),
            vmem_limit_bytes=limit),
    )(a, h)


def adjacency_hops(a, h, *, n_hops, out_dtype):
    """Apply H <- A @ H, n_hops times."""
    if n_hops <= 0:
        return h
    budget, limit, _ = _vmem_budget_limit()
    mp, kp = a.shape
    _, cp = h.shape
    ab, hb = a.dtype.itemsize, h.dtype.itemsize
    ob = jnp.dtype(out_dtype).itemsize

    if n_hops >= 2:
        tm_cands = [c for c in (1024, 512, 256, 128) if mp % c == 0] or [mp]
        for tm in tm_cands:                     # largest-first, sequential grid
            est = (2 * tm * kp * ab             # A strip, double-buffered
                   + kp * cp * hb               # resident initial H (1 buffer)
                   + 2 * kp * cp * ob           # ping-pong H scratch
                   + 2 * tm * cp * ob)          # output tile, double-buffered
            if est <= budget:
                return _fused_hops_call(a, h, n_hops=n_hops, tm=tm,
                                        out_dtype=out_dtype, vmem_limit=limit)

    # Fallback: one pallas_call per hop (H re-materialized in HBM each hop).
    for _ in range(n_hops):
        h = adj_matmul(a, h, out_dtype=out_dtype)
    return h


# ----------------------------------------------------------------------------
# Layer forward (mirrors SparseNGCNLayer.forward, inference mode)
# ----------------------------------------------------------------------------
def sparse_ngcn_layer_forward(adjacency, features, weight, bias,
                              iterations, dropout_rate, n_nodes, in_channels,
                              training=False, compute_dtype=jnp.bfloat16):
    """(n_nodes, in_channels) are static Python ints — no host sync on
    max(indices) — matching the module when every row/col index is present."""
    if training:
        # TODO(synk): training-mode dropout (pltpu.prng_seed/prng_random_bits).
        raise NotImplementedError("training-mode dropout not implemented")
    del dropout_rate  # identity in inference mode

    out_channels = weight.shape[1]
    np_pad = _round_up(n_nodes, 128)        # node dim (lanes of A / sublanes of H)
    cp_pad = _round_up(out_channels, 128)   # filter dim (lanes of W / H / out)
    # in_channels is intentionally NOT padded: kernel 1 uses a full-extent K
    # block, and padding K would only inflate the memory-bound X stream.

    # Densify the COO feature matrix directly at padded node count and in the
    # compute dtype (single scatter; no extra pad/cast HBM copies).
    frows, fcols = features["indices"][0], features["indices"][1]
    x_p = jnp.zeros((np_pad, in_channels), compute_dtype).at[frows, fcols].add(
        features["values"].astype(compute_dtype))

    w_p = jnp.zeros((in_channels, cp_pad), compute_dtype).at[:, :out_channels].set(
        weight.astype(compute_dtype))
    b_p = jnp.zeros((1, cp_pad), jnp.float32).at[:, :out_channels].set(
        bias.astype(jnp.float32))

    # spmm(features) @ W + bias -> (dropout: identity) -> relu, padded rows zeroed.
    h = xw_bias_relu(x_p, w_p, b_p, n_valid_rows=n_nodes, out_dtype=compute_dtype)

    if iterations > 1:
        arows, acols = adjacency["indices"][0], adjacency["indices"][1]
        a_p = jnp.zeros((np_pad, np_pad), compute_dtype).at[arows, acols].add(
            adjacency["values"].astype(compute_dtype))
        h = adjacency_hops(a_p, h, n_hops=iterations - 1, out_dtype=compute_dtype)

    return h[:n_nodes, :out_channels].astype(jnp.float32)


def xavier_uniform(key, shape):
    fan_in, fan_out = shape[0], shape[1]
    a = math.sqrt(6.0 / (fan_in + fan_out))
    return jax.random.uniform(key, shape, jnp.float32, minval=-a, maxval=a)


# ----------------------------------------------------------------------------
# Main
# ----------------------------------------------------------------------------
if __name__ == "__main__":
    key = jax.random.PRNGKey(0)
    k_w, k_b, k_x, k_a = jax.random.split(key, 4)

    n_nodes = 64
    in_channels = 32
    out_channels = 32
    iterations = 3
    dropout_rate = 0.5  # identity in inference mode

    # Parameters (Xavier uniform, deterministic).
    weight = xavier_uniform(k_w, (in_channels, out_channels))
    bias = xavier_uniform(k_b, (1, out_channels))

    # Sparse feature matrix in COO form (all entries listed so the PyTorch
    # max(indices)+1 shape recovery equals the true (N, in_channels) shape).
    x_dense = jax.random.normal(k_x, (n_nodes, in_channels), jnp.float32)
    rr, cc = jnp.meshgrid(jnp.arange(n_nodes), jnp.arange(in_channels),
                          indexing="ij")
    features = {
        "indices": jnp.stack([rr.reshape(-1), cc.reshape(-1)]).astype(jnp.int32),
        "values": x_dense.reshape(-1),
    }

    # Symmetrically normalized adjacency matrix, also given as COO.
    a_rand = jax.random.uniform(k_a, (n_nodes, n_nodes))
    a_bin = (a_rand < 0.1).astype(jnp.float32)
    a_sym = jnp.clip(a_bin + a_bin.T + jnp.eye(n_nodes, dtype=jnp.float32),
                     0.0, 1.0)
    deg = jnp.sum(a_sym, axis=1)
    d_inv_sqrt = 1.0 / jnp.sqrt(deg)
    a_norm = d_inv_sqrt[:, None] * a_sym * d_inv_sqrt[None, :]
    ar, ac = jnp.meshgrid(jnp.arange(n_nodes), jnp.arange(n_nodes),
                          indexing="ij")
    adjacency = {
        "indices": jnp.stack([ar.reshape(-1), ac.reshape(-1)]).astype(jnp.int32),
        "values": a_norm.reshape(-1),
    }

    forward = jax.jit(
        sparse_ngcn_layer_forward,
        static_argnames=("iterations", "dropout_rate", "n_nodes",
                         "in_channels", "training", "compute_dtype"))

    out = forward(adjacency, features, weight, bias,
                  iterations=iterations, dropout_rate=dropout_rate,
                  n_nodes=n_nodes, in_channels=in_channels, training=False)
    out = jax.block_until_ready(out)

    # Reference (pure JAX) with matching bf16-input / f32-accumulate rounding.
    bf16 = jnp.bfloat16
    ref = jnp.dot(x_dense.astype(bf16), weight.astype(bf16),
                  preferred_element_type=jnp.float32) + bias
    ref = jnp.maximum(ref, 0.0).astype(bf16)
    a_bf = a_norm.astype(bf16)
    for _ in range(iterations - 1):
        ref = jnp.dot(a_bf, ref, preferred_element_type=jnp.float32).astype(bf16)
    ref = ref.astype(jnp.float32)

    assert out.shape == (n_nodes, out_channels)
    assert jnp.allclose(out, ref, atol=2e-2, rtol=2e-2), \
        float(jnp.max(jnp.abs(out - ref)))

    print("KERNEL_OK")
</pallas_src>

<mosaic_0001>
module attributes {stable_mosaic.version = 11 : i64} {
  func.func @_xw_bias_relu_kernel(%arg0: i32, %arg1: memref<128x32xbf16, #tpu.memory_space<vmem>>, %arg2: memref<32x128xbf16, #tpu.memory_space<vmem>>, %arg3: memref<1x128xf32, #tpu.memory_space<vmem>>, %arg4: memref<128x128xbf16, #tpu.memory_space<vmem>>) attributes {dimension_semantics = [#tpu.dimension_semantics<parallel>], iteration_bounds = array<i64: 1>, scalar_prefetch = 0 : i64, scratch_operands = 0 : i64, tpu.core_type = #tpu.core_type<tc>, window_params = [{transform_indices = @transform_0, window_bounds = array<i64: 128, 32>}, {pipeline_mode = #tpu.pipeline_mode<synchronous>, transform_indices = @transform_1, window_bounds = array<i64: 32, 128>}, {pipeline_mode = #tpu.pipeline_mode<synchronous>, transform_indices = @transform_2, window_bounds = array<i64: 1, 128>}, {transform_indices = @transform_3, window_bounds = array<i64: 128, 128>}]} {
    %c0 = arith.constant 0 : index
    %c0_0 = arith.constant 0 : index
    %0 = vector.load %arg1[%c0, %c0_0] : memref<128x32xbf16, #tpu.memory_space<vmem>>, vector<128x32xbf16>
    %c0_1 = arith.constant 0 : index
    %c0_2 = arith.constant 0 : index
    %1 = vector.load %arg2[%c0_1, %c0_2] : memref<32x128xbf16, #tpu.memory_space<vmem>>, vector<32x128xbf16>
    %cst = arith.constant dense<0.000000e+00> : vector<128x128xf32>
    %2 = tpu.matmul %0, %1, %cst {dimension_numbers = #tpu.dot_dimension_numbers<[1], [0], [0], [1], [0, 0, 1, 1], [], []>} : vector<128x32xbf16>, vector<32x128xbf16>, vector<128x128xf32> -> vector<128x128xf32>
    %c0_3 = arith.constant 0 : index
    %c0_4 = arith.constant 0 : index
    %3 = vector.load %arg3[%c0_3, %c0_4] : memref<1x128xf32, #tpu.memory_space<vmem>>, vector<1x128xf32>
    %4 = vector.broadcast %3 : vector<1x128xf32> to vector<128x128xf32>
    %5 = arith.addf %2, %4 : vector<128x128xf32>
    %cst_5 = arith.constant 0.000000e+00 : f32
    %6 = vector.broadcast %cst_5 : f32 to vector<128x128xf32>
    %7 = arith.maximumf %5, %6 : vector<128x128xf32>
    %8 = tpu.iota {dimensions = array<i32: 0>} : vector<128x128xi32>
    %c128_i32 = arith.constant 128 : i32
    %9 = arith.muli %arg0, %c128_i32 : i32
    %10 = vector.broadcast %9 : i32 to vector<128x128xi32>
    %11 = arith.addi %8, %10 : vector<128x128xi32>
    %c64_i32 = arith.constant 64 : i32
    %12 = vector.broadcast %c64_i32 : i32 to vector<128x128xi32>
    %13 = arith.cmpi slt, %11, %12 : vector<128x128xi32>
    %cst_6 = arith.constant 0.000000e+00 : f32
    %14 = vector.broadcast %cst_6 : f32 to vector<128x128xf32>
    %15 = arith.select %13, %7, %14 : vector<128x128xi1>, vector<128x128xf32>
    %16 = arith.truncf %15 : vector<128x128xf32> to vector<128x128xbf16>
    %c0_7 = arith.constant 0 : index
    %c0_8 = arith.constant 0 : index
    %17 = vector.load %arg4[%c0_7, %c0_8] : memref<128x128xbf16, #tpu.memory_space<vmem>>, vector<128x128xbf16>
    tpu.vector_store %arg4[%c0_7, %c0_8], %16 {strides = array<i32>} : memref<128x128xbf16, #tpu.memory_space<vmem>>, vector<128x128xbf16>,
    return
  }
  func.func @transform_0(%arg0: i32) -> (i32, i32) {
    %c0_i32 = arith.constant 0 : i32
    %c0_i32_0 = arith.constant 0 : i32
    return %arg0, %c0_i32 : i32, i32
  }
  func.func @transform_1(%arg0: i32) -> (i32, i32) {
    %c0_i32 = arith.constant 0 : i32
    %c0_i32_0 = arith.constant 0 : i32
    %c0_i32_1 = arith.constant 0 : i32
    return %c0_i32, %c0_i32_0 : i32, i32
  }
  func.func @transform_2(%arg0: i32) -> (i32, i32) {
    %c0_i32 = arith.constant 0 : i32
    %c0_i32_0 = arith.constant 0 : i32
    %c0_i32_1 = arith.constant 0 : i32
    return %c0_i32, %c0_i32_0 : i32, i32
  }
  func.func @transform_3(%arg0: i32) -> (i32, i32) {
    %c0_i32 = arith.constant 0 : i32
    %c0_i32_0 = arith.constant 0 : i32
    return %arg0, %c0_i32 : i32, i32
  }
}

module attributes {stable_mosaic.version = 11 : i64} {
  func.func @_fused_hops_kernel(%arg0: i32, %arg1: i32, %arg2: memref<128x128xbf16, #tpu.memory_space<vmem>>, %arg3: memref<128x128xbf16, #tpu.memory_space<vmem>>, %arg4: memref<128x128xbf16, #tpu.memory_space<vmem>>, %arg5: memref<2x128x128xbf16, #tpu.memory_space<vmem>>) attributes {dimension_semantics = [#tpu.dimension_semantics<arbitrary>, #tpu.dimension_semantics<arbitrary>], iteration_bounds = array<i64: 2, 1>, scalar_prefetch = 0 : i64, scratch_operands = 1 : i64, tpu.core_type = #tpu.core_type<tc>, window_params = [{transform_indices = @transform_0, window_bounds = array<i64: 128, 128>}, {pipeline_mode = #tpu.pipeline_mode<synchronous>, transform_indices = @transform_1, window_bounds = array<i64: 128, 128>}, {transform_indices = @transform_2, window_bounds = array<i64: 128, 128>}]} {
    %c0_i32 = arith.constant 0 : i32
    %0 = arith.cmpi eq, %arg0, %c0_i32 : i32
    %c0_i32_0 = arith.constant 0 : i32
    %1 = arith.cmpi eq, %arg1, %c0_i32_0 : i32
    %2 = arith.andi %0, %1 : i1
    %3 = arith.extui %2 : i1 to i32
    %c0_i32_1 = arith.constant 0 : i32
    %4 = arith.cmpi ne, %3, %c0_i32_1 : i32
    scf.if %4 {
      %c0_11 = arith.constant 0 : index
      %c0_12 = arith.constant 0 : index
      %21 = vector.load %arg3[%c0_11, %c0_12] : memref<128x128xbf16, #tpu.memory_space<vmem>>, vector<128x128xbf16>
      %c0_13 = arith.constant 0 : index
      %c0_14 = arith.constant 0 : index
      %c0_15 = arith.constant 0 : index
      %22 = vector.load %arg5[%c0_13, %c0_14, %c0_15] : memref<2x128x128xbf16, #tpu.memory_space<vmem>>, vector<1x128x128xbf16>
      %23 = vector.shape_cast %22 : vector<1x128x128xbf16> to vector<128x128xbf16>
      %24 = vector.shape_cast %21 : vector<128x128xbf16> to vector<1x128x128xbf16>
      tpu.vector_store %arg5[%c0_13, %c0_14, %c0_15], %24 {strides = array<i32>} : memref<2x128x128xbf16, #tpu.memory_space<vmem>>, vector<1x128x128xbf16>,
    } else {
    }
    %c1_i32 = arith.constant 1 : i32
    %5 = arith.andi %arg0, %c1_i32 : i32
    %6 = arith.index_cast %5 : i32 to index
    %c0 = arith.constant 0 : index
    %c0_2 = arith.constant 0 : index
    %7 = vector.load %arg5[%6, %c0, %c0_2] : memref<2x128x128xbf16, #tpu.memory_space<vmem>>, vector<1x128x128xbf16>
    %8 = vector.shape_cast %7 : vector<1x128x128xbf16> to vector<128x128xbf16>
    %c0_3 = arith.constant 0 : index
    %c0_4 = arith.constant 0 : index
    %9 = vector.load %arg2[%c0_3, %c0_4] : memref<128x128xbf16, #tpu.memory_space<vmem>>, vector<128x128xbf16>
    %cst = arith.constant dense<0.000000e+00> : vector<128x128xf32>
    %10 = tpu.matmul %9, %8, %cst {dimension_numbers = #tpu.dot_dimension_numbers<[1], [0], [0], [1], [0, 0, 1, 1], [], []>} : vector<128x128xbf16>, vector<128x128xbf16>, vector<128x128xf32> -> vector<128x128xf32>
    %11 = arith.truncf %10 : vector<128x128xf32> to vector<128x128xbf16>
    %c128_i32 = arith.constant 128 : i32
    %12 = arith.muli %arg1, %c128_i32 : i32
    %13 = tpu.assume_multiple %12, 128 : i32
    %c0_i32_5 = arith.constant 0 : i32
    %14 = arith.cmpi eq, %5, %c0_i32_5 : i32
    %15 = arith.extui %14 : i1 to i32
    %c0_i32_6 = arith.constant 0 : i32
    %16 = arith.cmpi ne, %15, %c0_i32_6 : i32
    scf.if %16 {
      %c1 = arith.constant 1 : index
      %21 = arith.index_cast %13 : i32 to index
      %c0_11 = arith.constant 0 : index
      %22 = vector.load %arg5[%c1, %21, %c0_11] : memref<2x128x128xbf16, #tpu.memory_space<vmem>>, vector<1x128x128xbf16>
      %23 = vector.shape_cast %22 : vector<1x128x128xbf16> to vector<128x128xbf16>
      %24 = vector.shape_cast %11 : vector<128x128xbf16> to vector<1x128x128xbf16>
      tpu.vector_store %arg5[%c1, %21, %c0_11], %24 {strides = array<i32>} : memref<2x128x128xbf16, #tpu.memory_space<vmem>>, vector<1x128x128xbf16>,
    } else {
    }
    %c1_i32_7 = arith.constant 1 : i32
    %17 = arith.cmpi eq, %5, %c1_i32_7 : i32
    %18 = arith.extui %17 : i1 to i32
    %c0_i32_8 = arith.constant 0 : i32
    %19 = arith.cmpi ne, %18, %c0_i32_8 : i32
    scf.if %19 {
      %c0_11 = arith.constant 0 : index
      %21 = arith.index_cast %13 : i32 to index
      %c0_12 = arith.constant 0 : index
      %22 = vector.load %arg5[%c0_11, %21, %c0_12] : memref<2x128x128xbf16, #tpu.memory_space<vmem>>, vector<1x128x128xbf16>
      %23 = vector.shape_cast %22 : vector<1x128x128xbf16> to vector<128x128xbf16>
      %24 = vector.shape_cast %11 : vector<128x128xbf16> to vector<1x128x128xbf16>
      tpu.vector_store %arg5[%c0_11, %21, %c0_12], %24 {strides = array<i32>} : memref<2x128x128xbf16, #tpu.memory_space<vmem>>, vector<1x128x128xbf16>,
    } else {
    }
    %c0_9 = arith.constant 0 : index
    %c0_10 = arith.constant 0 : index
    %20 = vector.load %arg4[%c0_9, %c0_10] : memref<128x128xbf16, #tpu.memory_space<vmem>>, vector<128x128xbf16>
    tpu.vector_store %arg4[%c0_9, %c0_10], %11 {strides = array<i32>} : memref<128x128xbf16, #tpu.memory_space<vmem>>, vector<128x128xbf16>,
    return
  }
  func.func @transform_0(%arg0: i32, %arg1: i32) -> (i32, i32) {
    %c0_i32 = arith.constant 0 : i32
    %c0_i32_0 = arith.constant 0 : i32
    return %arg1, %c0_i32 : i32, i32
  }
  func.func @transform_1(%arg0: i32, %arg1: i32) -> (i32, i32) {
    %c0_i32 = arith.constant 0 : i32
    %c0_i32_0 = arith.constant 0 : i32
    %c0_i32_1 = arith.constant 0 : i32
    return %c0_i32, %c0_i32_0 : i32, i32
  }
  func.func @transform_2(%arg0: i32, %arg1: i32) -> (i32, i32) {
    %c0_i32 = arith.constant 0 : i32
    %c0_i32_0 = arith.constant 0 : i32
    return %arg1, %c0_i32 : i32, i32
  }
}

</mosaic_0001>

<llo_original>
// kernel: sparse_ngcn_layer_forward.2
$region0: #{sparse_ngcn_layer_forward.2}
  #allocation0 [shape = 'u32[]', space=smem, size = 0x4, offset = 0x4, fixed_abs, tag = 'smem constant byte address 0x4 - core index']
  #allocation1 [shape = 'u32[144,128]{1,0:T(1,128)}', space=vmem, size = 0x12000, scoped, tag = 'internal scratch']
  %s0 = inlined_call_operand.vmem [shape: bf16[128,32], index: 0, kind: input, shape index: {}]
  %s1 = inlined_call_operand.vmem [shape: bf16[32,128], index: 1, kind: input, shape index: {}]
  %s2 = inlined_call_operand.vmem [shape: f32[1,128], index: 2, kind: input, shape index: {}]
  %s3 = inlined_call_operand.vmem [shape: bf16[128,128], index: 3, kind: output, shape index: {}]
  %s4 = sld [smem:[#allocation0]]
  $region22: #{sparse_ngcn_layer_forward.2} parent=0
    _
  %s6 = ssub.s32 1, %s4
  %s7 = scalar_select 0, %s6, %s4
  // Predicated region
  $region2: #{sparse_ngcn_layer_forward.2} parent=0 // pred_check
    _
  $region3: #{sparse_ngcn_layer_forward.2} parent=0 // pred_check_branch
    %9 = sbr.rel (0) target = $region5
  $region4: #{sparse_ngcn_layer_forward.2} parent=0 // pred_region
    _
  $region5: #{sparse_ngcn_layer_forward.2} parent=0 // pred_fallthru
    _
  // Predicated region
  $region6: #{sparse_ngcn_layer_forward.2} parent=0 // pred_check
    _
  $region7: #{sparse_ngcn_layer_forward.2} parent=0 // pred_check_branch
    %11 = sbr.rel (0) target = $region9
  $region8: #{sparse_ngcn_layer_forward.2} parent=0 // pred_region
    _
  $region9: #{sparse_ngcn_layer_forward.2} parent=0 // pred_fallthru
    _
  // Predicated region
  $region10: #{sparse_ngcn_layer_forward.2} parent=0 // pred_check
    _
  $region11: #{sparse_ngcn_layer_forward.2} parent=0 // pred_check_branch
    %13 = sbr.rel (0) target = $region13
  $region12: #{sparse_ngcn_layer_forward.2} parent=0 // pred_region
    _
  $region13: #{sparse_ngcn_layer_forward.2} parent=0 // pred_fallthru
    _
  %v15 = vld [vmem:[%s0] sm:$0xf]
  %v16 = vld [vmem:[%s0 + $0x4] sm:$0xf]
  %v17 = vld [vmem:[%s0 + $0x8] sm:$0xf]
  %v18 = vld [vmem:[%s0 + $0xc] sm:$0xf]
  %v19 = vld [vmem:[%s0 + $0x10] sm:$0xf]
  %v20 = vld [vmem:[%s0 + $0x14] sm:$0xf]
  %v21 = vld [vmem:[%s0 + $0x18] sm:$0xf]
  %v22 = vld [vmem:[%s0 + $0x1c] sm:$0xf]
  %v23 = vld [vmem:[%s0 + $0x20] sm:$0xf]
  %v24 = vld [vmem:[%s0 + $0x24] sm:$0xf]
  %v25 = vld [vmem:[%s0 + $0x28] sm:$0xf]
  %v26 = vld [vmem:[%s0 + $0x2c] sm:$0xf]
  %v27 = vld [vmem:[%s0 + $0x30] sm:$0xf]
  %v28 = vld [vmem:[%s0 + $0x34] sm:$0xf]
  %v29 = vld [vmem:[%s0 + $0x38] sm:$0xf]
  %v30 = vld [vmem:[%s0 + $0x3c] sm:$0xf]
  %v31 = vld [vmem:[%s1] sm:$0xf]
  %v32 = vld [vmem:[%s1 + $0x4] sm:$0xf]
  %v33 = vld [vmem:[%s1 + $0x8] sm:$0xf]
  %v34 = vld [vmem:[%s1 + $0xc] sm:$0xf]
  %v35 = vld [vmem:[%s2] sm:$0x1]
  %v37 = vlaneseq
  %v38 = vshrl.u32 %v37, 7
  %v39 = vsub.s32 0, %v38
  %v40 = vrot.slane %v35, %v39
  %v58 = vunpack.c.l.b16 %v15
  %v59 = vunpack.c.l.b16 %v16
  %v60 = vunpack.c.l.b16 %v17
  %v61 = vunpack.c.l.b16 %v18
  %v62 = vunpack.c.l.b16 %v19
  %v63 = vunpack.c.l.b16 %v20
  %v64 = vunpack.c.l.b16 %v21
  %v65 = vunpack.c.l.b16 %v22
  %v66 = vunpack.c.l.b16 %v23
  %v67 = vunpack.c.l.b16 %v24
  %v68 = vunpack.c.l.b16 %v25
  %v69 = vunpack.c.l.b16 %v26
  %v70 = vunpack.c.l.b16 %v27
  %v71 = vunpack.c.l.b16 %v28
  %v72 = vunpack.c.l.b16 %v29
  %v73 = vunpack.c.l.b16 %v30
  %v74 = vpack.c.b16 %v59, %v58
  %v75 = vpack.c.b16 %v61, %v60
  %v76 = vpack.c.b16 %v63, %v62
  %v77 = vpack.c.b16 %v65, %v64
  %v78 = vpack.c.b16 %v67, %v66
  %v79 = vpack.c.b16 %v69, %v68
  %v80 = vpack.c.b16 %v71, %v70
  %v81 = vpack.c.b16 %v73, %v72
  %v86 = vunpack.c.l.b16 %v31
  %v87 = vunpack.c.l.b16 %v32
  %v88 = vunpack.c.l.b16 %v33
  %v89 = vunpack.c.l.b16 %v34
  %v90 = vpack.c.b16 %v87, %v86
  %v91 = vpack.c.b16 %v89, %v88
  %vm94 = vcmask 261120
  %v96 = vsel %vm94, %v74, 0
  %v99 = vsel %vm94, %v75, 0
  %v102 = vsel %vm94, %v76, 0
  %v105 = vsel %vm94, %v77, 0
  %v108 = vsel %vm94, %v78, 0
  %v111 = vsel %vm94, %v79, 0
  %v114 = vsel %vm94, %v80, 0
  %v117 = vsel %vm94, %v81, 0
  %119 = vmatprep.subr.bf16.mxu0 0
  %120 = vmatpush1.bf16.msra.mxu0 %v90
  %121 = vmatprep.subr.bf16.mxu0 0
  %122 = vmatpush1.bf16.msra.mxu0 %v91
  %123 = vmatprep.subr.bf16.mxu0 0
  %124 = vmatpush1.bf16.msra.mxu0 0
  %125 = vmatprep.subr.bf16.mxu0 0
  %126 = vmatpush1.bf16.msra.mxu0 0
  %127 = vmatprep.subr.bf16.mxu0 0
  %128 = vmatpush1.bf16.msra.mxu0 0
  %129 = vmatprep.subr.bf16.mxu0 0
  %130 = vmatpush1.bf16.msra.mxu0 0
  %131 = vmatprep.subr.bf16.mxu0 0
  %132 = vmatpush1.bf16.msra.mxu0 0
  %133 = vmatprep.subr.bf16.mxu0 0
  %134 = vmatpush1.bf16.msra.mxu0 0
  %135 = vmatprep.subr.bf16.mxu0 0
  %136 = vmatpush1.bf16.msra.mxu0 0
  %137 = vmatprep.subr.bf16.mxu0 0
  %138 = vmatpush1.bf16.msra.mxu0 0
  %139 = vmatprep.subr.bf16.mxu0 0
  %140 = vmatpush1.bf16.msra.mxu0 0
  %141 = vmatprep.subr.bf16.mxu0 0
  %142 = vmatpush1.bf16.msra.mxu0 0
  %143 = vmatprep.subr.bf16.mxu0 0
  %144 = vmatpush1.bf16.msra.mxu0 0
  %145 = vmatprep.subr.bf16.mxu0 0
  %146 = vmatpush1.bf16.msra.mxu0 0
  %147 = vmatprep.subr.bf16.mxu0 0
  %148 = vmatpush1.bf16.msra.mxu0 0
  %149 = vmatprep.subr.bf16.mxu0 0
  %150 = vmatpush1.bf16.msra.mxu0 0
  %151 = vmatprep.mubr.bf16.mxu0 0
  %152 = vmatmul.mubr.bf16.gmra.mrb[0].mxu0 %v96
  %v153 = vpop.f32.mrb[0].mxu0
  %v154 = vadd.f32 %v40, %v153
  %v155 = vpop.f32.mrb[0].mxu0
  %v156 = vpop.f32.mrb[0].mxu0
  %v157 = vadd.f32 %v40, %v156
  %v158 = vpop.f32.mrb[0].mxu0
  %159 = vmatprep.mubr.bf16.mxu0 0
  %160 = vmatmul.mubr.bf16.gmra.mrb[0].mxu0 %v99
  %v161 = vpop.f32.mrb[0].mxu0
  %v162 = vadd.f32 %v40, %v161
  %v163 = vpop.f32.mrb[0].mxu0
  %v164 = vpop.f32.mrb[0].mxu0
  %v165 = vadd.f32 %v40, %v164
  %v166 = vpop.f32.mrb[0].mxu0
  %167 = vmatprep.mubr.bf16.mxu0 0
  %168 = vmatmul.mubr.bf16.gmra.mrb[0].mxu0 %v102
  %v169 = vpop.f32.mrb[0].mxu0
  %v170 = vadd.f32 %v40, %v169
  %v171 = vpop.f32.mrb[0].mxu0
  %v172 = vpop.f32.mrb[0].mxu0
  %v173 = vadd.f32 %v40, %v172
  %v174 = vpop.f32.mrb[0].mxu0
  %175 = vmatprep.mubr.bf16.mxu0 0
  %176 = vmatmul.mubr.bf16.gmra.mrb[0].mxu0 %v105
  %v177 = vpop.f32.mrb[0].mxu0
  %v178 = vadd.f32 %v40, %v177
  %v179 = vpop.f32.mrb[0].mxu0
  %v180 = vpop.f32.mrb[0].mxu0
  %v181 = vadd.f32 %v40, %v180
  %v182 = vpop.f32.mrb[0].mxu0
  %183 = vmatprep.mubr.bf16.mxu0 0
  %184 = vmatmul.mubr.bf16.gmra.mrb[0].mxu0 %v108
  %v185 = vpop.f32.mrb[0].mxu0
  %v186 = vadd.f32 %v40, %v185
  %v187 = vpop.f32.mrb[0].mxu0
  %v188 = vpop.f32.mrb[0].mxu0
  %v189 = vadd.f32 %v40, %v188
  %v190 = vpop.f32.mrb[0].mxu0
  %191 = vmatprep.mubr.bf16.mxu0 0
  %192 = vmatmul.mubr.bf16.gmra.mrb[0].mxu0 %v111
  %v193 = vpop.f32.mrb[0].mxu0
  %v194 = vadd.f32 %v40, %v193
  %v195 = vpop.f32.mrb[0].mxu0
  %v196 = vpop.f32.mrb[0].mxu0
  %v197 = vadd.f32 %v40, %v196
  %v198 = vpop.f32.mrb[0].mxu0
  %199 = vmatprep.mubr.bf16.mxu0 0
  %200 = vmatmul.mubr.bf16.gmra.mrb[0].mxu0 %v114
  %v201 = vpop.f32.mrb[0].mxu0
  %v202 = vadd.f32 %v40, %v201
  %v203 = vpop.f32.mrb[0].mxu0
  %v204 = vpop.f32.mrb[0].mxu0
  %v205 = vadd.f32 %v40, %v204
  %v206 = vpop.f32.mrb[0].mxu0
  %207 = vmatprep.mubr.bf16.mxu0 0
  %208 = vmatmul.mubr.bf16.gmra.mrb[0].mxu0 %v117
  %v209 = vpop.f32.mrb[0].mxu0
  %v210 = vadd.f32 %v40, %v209
  %v211 = vpop.f32.mrb[0].mxu0
  %v212 = vpop.f32.mrb[0].mxu0
  %v213 = vadd.f32 %v40, %v212
  %v214 = vpop.f32.mrb[0].mxu0
  %215 = vdwg.mxu0
  %v216 = vmax.f32 %v154, 0.0
  %v217 = vmax.f32 %v157, 0.0
  %v218 = vmax.f32 %v162, 0.0
  %v219 = vmax.f32 %v165, 0.0
  %v220 = vmax.f32 %v170, 0.0
  %v221 = vmax.f32 %v173, 0.0
  %v222 = vmax.f32 %v178, 0.0
  %v223 = vmax.f32 %v181, 0.0
  %v224 = vmax.f32 %v186, 0.0
  %v225 = vmax.f32 %v189, 0.0
  %v226 = vmax.f32 %v194, 0.0
  %v227 = vmax.f32 %v197, 0.0
  %v228 = vmax.f32 %v202, 0.0
  %v229 = vmax.f32 %v205, 0.0
  %v230 = vmax.f32 %v210, 0.0
  %v231 = vmax.f32 %v213, 0.0
  %v232 = vlaneseq
  %v233 = vshrl.u32 %v232, 7
  %v234 = vadd.s32 %v233, 8
  %v235 = vadd.s32 %v233, 16
  %v236 = vadd.s32 %v233, 24
  %v237 = vadd.s32 %v233, 32
  %v238 = vadd.s32 %v233, 40
  %v239 = vadd.s32 %v233, 48
  %v240 = vadd.s32 %v233, 56
  %v241 = vadd.s32 %v233, 64
  %v242 = vadd.s32 %v233, 72
  %v243 = vadd.s32 %v233, 80
  %v244 = vadd.s32 %v233, 88
  %v245 = vadd.s32 %v233, 96
  %v246 = vadd.s32 %v233, 104
  %v247 = vadd.s32 %v233, 112
  %v248 = vadd.s32 %v233, 120
  %s249 = smul.u32 0, 128
  %v250 = vstv %s249
  %v251 = vadd.s32 %v233, %v250
  %v252 = vadd.s32 %v234, %v250
  %v253 = vadd.s32 %v235, %v250
  %v254 = vadd.s32 %v236, %v250
  %v255 = vadd.s32 %v237, %v250
  %v256 = vadd.s32 %v238, %v250
  %v257 = vadd.s32 %v239, %v250
  %v258 = vadd.s32 %v240, %v250
  %v259 = vadd.s32 %v241, %v250
  %v260 = vadd.s32 %v242, %v250
  %v261 = vadd.s32 %v243, %v250
  %v262 = vadd.s32 %v244, %v250
  %v263 = vadd.s32 %v245, %v250
  %v264 = vadd.s32 %v246, %v250
  %v265 = vadd.s32 %v247, %v250
  %v266 = vadd.s32 %v248, %v250
  %vm267 = vcmp.lt.s32.totalorder %v251, 64
  %vm268 = vcmp.lt.s32.totalorder %v252, 64
  %vm269 = vcmp.lt.s32.totalorder %v253, 64
  %vm270 = vcmp.lt.s32.totalorder %v254, 64
  %vm271 = vcmp.lt.s32.totalorder %v255, 64
  %vm272 = vcmp.lt.s32.totalorder %v256, 64
  %vm273 = vcmp.lt.s32.totalorder %v257, 64
  %vm274 = vcmp.lt.s32.totalorder %v258, 64
  %vm275 = vcmp.lt.s32.totalorder %v259, 64
  %vm276 = vcmp.lt.s32.totalorder %v260, 64
  %vm277 = vcmp.lt.s32.totalorder %v261, 64
  %vm278 = vcmp.lt.s32.totalorder %v262, 64
  %vm279 = vcmp.lt.s32.totalorder %v263, 64
  %vm280 = vcmp.lt.s32.totalorder %v264, 64
  %vm281 = vcmp.lt.s32.totalorder %v265, 64
  %vm282 = vcmp.lt.s32.totalorder %v266, 64
  %v283 = vsel %vm267, %v216, 0.0
  %v284 = vsel %vm268, %v217, 0.0
  %v285 = vsel %vm269, %v218, 0.0
  %v286 = vsel %vm270, %v219, 0.0
  %v287 = vsel %vm271, %v220, 0.0
  %v288 = vsel %vm272, %v221, 0.0
  %v289 = vsel %vm273, %v222, 0.0
  %v290 = vsel %vm274, %v223, 0.0
  %v291 = vsel %vm275, %v224, 0.0
  %v292 = vsel %vm276, %v225, 0.0
  %v293 = vsel %vm277, %v226, 0.0
  %v294 = vsel %vm278, %v227, 0.0
  %v295 = vsel %vm279, %v228, 0.0
  %v296 = vsel %vm280, %v229, 0.0
  %v297 = vsel %vm281, %v230, 0.0
  %v298 = vsel %vm282, %v231, 0.0
  %v299 = vpack.c.bf16 %v284, %v283
  %v300 = vpack.c.bf16 %v286, %v285
  %v301 = vpack.c.bf16 %v288, %v287
  %v302 = vpack.c.bf16 %v290, %v289
  %v303 = vpack.c.bf16 %v292, %v291
  %v304 = vpack.c.bf16 %v294, %v293
  %v305 = vpack.c.bf16 %v296, %v295
  %v306 = vpack.c.bf16 %v298, %v297
  %v315 = vunpack.c.l.b16 %v299
  %v316 = vunpack.c.h.b16 %v299
  %v317 = vunpack.c.l.b16 %v300
  %v318 = vunpack.c.h.b16 %v300
  %v319 = vunpack.c.l.b16 %v301
  %v320 = vunpack.c.h.b16 %v301
  %v321 = vunpack.c.l.b16 %v302
  %v322 = vunpack.c.h.b16 %v302
  %v323 = vunpack.c.l.b16 %v303
  %v324 = vunpack.c.h.b16 %v303
  %v325 = vunpack.c.l.b16 %v304
  %v326 = vunpack.c.h.b16 %v304
  %v327 = vunpack.c.l.b16 %v305
  %v328 = vunpack.c.h.b16 %v305
  %v329 = vunpack.c.l.b16 %v306
  %v330 = vunpack.c.h.b16 %v306
  %v331 = vpack.c.b16 %v315, %v315
  %v332 = vpack.c.b16 %v316, %v316
  %v333 = vpack.c.b16 %v317, %v317
  %v334 = vpack.c.b16 %v318, %v318
  %v335 = vpack.c.b16 %v319, %v319
  %v336 = vpack.c.b16 %v320, %v320
  %v337 = vpack.c.b16 %v321, %v321
  %v338 = vpack.c.b16 %v322, %v322
  %v339 = vpack.c.b16 %v323, %v323
  %v340 = vpack.c.b16 %v324, %v324
  %v341 = vpack.c.b16 %v325, %v325
  %v342 = vpack.c.b16 %v326, %v326
  %v343 = vpack.c.b16 %v327, %v327
  %v344 = vpack.c.b16 %v328, %v328
  %v345 = vpack.c.b16 %v329, %v329
  %v346 = vpack.c.b16 %v330, %v330
  %363 = vst [vmem:[%s3] sm:$0xf] %v331
  %364 = vst [vmem:[%s3 + $0x4] sm:$0xf] %v332
  %365 = vst [vmem:[%s3 + $0x8] sm:$0xf] %v333
  %366 = vst [vmem:[%s3 + $0xc] sm:$0xf] %v334
  %367 = vst [vmem:[%s3 + $0x10] sm:$0xf] %v335
  %368 = vst [vmem:[%s3 + $0x14] sm:$0xf] %v336
  %369 = vst [vmem:[%s3 + $0x18] sm:$0xf] %v337
  %370 = vst [vmem:[%s3 + $0x1c] sm:$0xf] %v338
  %371 = vst [vmem:[%s3 + $0x20] sm:$0xf] %v339
  %372 = vst [vmem:[%s3 + $0x24] sm:$0xf] %v340
  %373 = vst [vmem:[%s3 + $0x28] sm:$0xf] %v341
  %374 = vst [vmem:[%s3 + $0x2c] sm:$0xf] %v342
  %375 = vst [vmem:[%s3 + $0x30] sm:$0xf] %v343
  %376 = vst [vmem:[%s3 + $0x34] sm:$0xf] %v344
  %377 = vst [vmem:[%s3 + $0x38] sm:$0xf] %v345
  %378 = vst [vmem:[%s3 + $0x3c] sm:$0xf] %v346
  // Predicated region
  $region14: #{sparse_ngcn_layer_forward.2} parent=0 // pred_check
    _
  $region15: #{sparse_ngcn_layer_forward.2} parent=0 // pred_check_branch
    %380 = sbr.rel (0) target = $region17
  $region16: #{sparse_ngcn_layer_forward.2} parent=0 // pred_region
    _
  $region17: #{sparse_ngcn_layer_forward.2} parent=0 // pred_fallthru
    _
  // Predicated region
  $region18: #{sparse_ngcn_layer_forward.2} parent=0 // pred_check
    _
  $region19: #{sparse_ngcn_layer_forward.2} parent=0 // pred_check_branch
    %382 = sbr.rel (0) target = $region21
  $region20: #{sparse_ngcn_layer_forward.2} parent=0 // pred_region
    _
  $region21: #{sparse_ngcn_layer_forward.2} parent=0 // pred_fallthru
    _

// kernel: sparse_ngcn_layer_forward.3
$region0: #{sparse_ngcn_layer_forward.3}
  #allocation0 [shape = 'u32[]', space=smem, size = 0x4, offset = 0x4, fixed_abs, tag = 'smem constant byte address 0x4 - core index']
  #allocation1 [shape = 'u32[144,128]{1,0:T(1,128)}', space=vmem, size = 0x12000, scoped, tag = 'internal scratch']
  #allocation2 [shape = 'bf16[2,128,128]{2,1,0:T(16,128)(2,1)}', space=vmem, size = 0x10000, scoped, tag = 'scratch operand']
  %s0 = inlined_call_operand.vmem [shape: bf16[128,128], index: 0, kind: input, shape index: {}]
  %s1 = inlined_call_operand.vmem [shape: bf16[128,128], index: 1, kind: input, shape index: {}]
  %s2 = inlined_call_operand.vmem [shape: bf16[128,128], index: 2, kind: output, shape index: {}]
  %s3 = sld [smem:[#allocation0]]
  $region53: #{sparse_ngcn_layer_forward.3} parent=0
    _
  %s5 = ssub.s32 1, %s3
  %s6 = scalar_select 0, %s5, %s3
  loop: start=0, step=1, limit=4
  $region2: #{sparse_ngcn_layer_forward.3} parent=0 // loop_pre_header
    _
  $region3: #{sparse_ngcn_layer_forward.3} parent=0 // loop_header
    %s8 = sphi 0, %s12
    %p9 = scmp.ge.s32.totalorder %s8, 4
    %s15 = sphi 0, %s27
    %s16 = sphi 0, %s23
    %s17 = sphi 0, %s15
    %s18 = sphi 0, %s16
    %s19 = sphi 0, %s17
    %s20 = sphi 0, %s18
    %s30 = sphi 0, %s32
    %s33 = sphi 0, %s30
    %s34 = sphi 0, %s33
    %s50 = sphi 0, %s34
    %s54 = sphi 0, %s54
    %s56 = sphi 0, %s54
    %s57 = sphi 0, %s56
    %s71 = sphi 0, %s57
    %s77 = sphi 0, %s79
    %s80 = sphi 0, %s77
    %s81 = sphi 0, %s80
    %s97 = sphi 0, %s81
  $region4: #{sparse_ngcn_layer_forward.3} parent=0 // loop_header_branch
    %11 = sbr.rel (%p9) target = $region8
  $region5: #{sparse_ngcn_layer_forward.3} parent=0 // loop_body
    %s13 = ssub.s32 %s8, 1
    %s14 = ssub.s32 %s8, 2
    %s21 = sadd.s32 1, %s16
    %p22 = scmp.ge.s32.totalorder %s21, 1
    %s23 = scalar_select %p22, 0, %s21
    %s24 = sadd.s32 1, %s15
    %s25 = scalar_select %p22, %s24, %s15
    %p26 = scmp.ge.s32.totalorder %s25, 2
    %s27 = scalar_select %p26, 0, %s25
    %s28 = ssub.s32 %s16, %s23
    %p29 = scmp.eq.s32.totalorder %s28, 0
    %s31 = sadd.s32 %s30, 1
    %s32 = scalar_select %p29, %s30, %s31
    %p35 = pneg %p29
    %p36 = scmp.eq.s32.totalorder %s8, 1
    %p37 = por %p35, %p36
    %p38 = scmp.ne.s32.totalorder %s30, %s33
    %p39 = scmp.eq.s32.totalorder %s8, 0
    %p40 = por %p38, %p39
    %p41 = scmp.ne.s32.totalorder %s30, %s33
    %p42 = scmp.eq.s32.totalorder %s13, 1
    %p43 = por %p41, %p42
    %p44 = scmp.ne.s32.totalorder %s33, %s34
    %p45 = scmp.eq.s32.totalorder %s13, 0
    %p46 = por %p44, %p45
    %p47 = scmp.ne.s32.totalorder %s33, %s34
    %p48 = scmp.eq.s32.totalorder %s14, 1
    %p49 = por %p47, %p48
    %p51 = scmp.ne.s32.totalorder %s34, %s50
    %p52 = scmp.eq.s32.totalorder %s14, 0
    %p53 = por %p51, %p52
    %s55 = sadd.s32 %s54, 1
    %p58 = scmp.eq.s32.totalorder %s8, 1
    %p59 = scmp.ne.s32.totalorder %s54, %s56
    %p60 = scmp.eq.s32.totalorder %s8, 0
    %p61 = por %p59, %p60
    %p62 = scmp.ne.s32.totalorder %s54, %s56
    %p63 = scmp.eq.s32.totalorder %s13, 1
    %p64 = por %p62, %p63
    %p65 = scmp.ne.s32.totalorder %s56, %s57
    %p66 = scmp.eq.s32.totalorder %s13, 0
    %p67 = por %p65, %p66
    %p68 = scmp.ne.s32.totalorder %s56, %s57
    %p69 = scmp.eq.s32.totalorder %s14, 1
    %p70 = por %p68, %p69
    %p72 = scmp.ne.s32.totalorder %s57, %s71
    %p73 = scmp.eq.s32.totalorder %s14, 0
    %p74 = por %p72, %p73
    %s75 = ssub.s32 %s16, %s23
    %p76 = scmp.eq.s32.totalorder %s75, 0
    %s78 = sadd.s32 %s77, 1
    %s79 = scalar_select %p76, %s77, %s78
    %p82 = pneg %p76
    %p83 = scmp.eq.s32.totalorder %s8, 1
    %p84 = por %p82, %p83
    %p85 = scmp.ne.s32.totalorder %s77, %s80
    %p86 = scmp.eq.s32.totalorder %s8, 0
    %p87 = por %p85, %p86
    %p88 = scmp.ne.s32.totalorder %s77, %s80
    %p89 = scmp.eq.s32.totalorder %s13, 1
    %p90 = por %p88, %p89
    %p91 = scmp.ne.s32.totalorder %s80, %s81
    %p92 = scmp.eq.s32.totalorder %s13, 0
    %p93 = por %p91, %p92
    %p94 = scmp.ne.s32.totalorder %s80, %s81
    %p95 = scmp.eq.s32.totalorder %s14, 1
    %p96 = por %p94, %p95
    %p98 = scmp.ne.s32.totalorder %s81, %s97
    %p99 = scmp.eq.s32.totalorder %s14, 0
    %p100 = por %p98, %p99
    %p101 = scmp.le.s32.totalorder 1, %s8
    %p102 = scmp.lt.s32.totalorder %s8, 3
    %p103 = pnand %p101, %p102
    %p104 = pneg %p103
    // Predicated region
    $region9: #{sparse_ngcn_layer_forward.3} parent=5 // pred_check
      _
    $region10: #{sparse_ngcn_layer_forward.3} parent=5 // pred_check_branch
      %106 = sbr.rel (%p103) target = $region12
    $region11: #{sparse_ngcn_layer_forward.3} parent=5 // pred_region
      %s107 = ssub.s32 %s8, 1
      // Predicated region
      $region13: #{sparse_ngcn_layer_forward.3} parent=11 // pred_check
        %p108 = pneg %p46
      $region14: #{sparse_ngcn_layer_forward.3} parent=11 // pred_check_branch
        %110 = sbr.rel (%p108) target = $region16
      $region15: #{sparse_ngcn_layer_forward.3} parent=11 // pred_region
        %s111 = smul.u32 16, %s18
        %p112 = scmp.lt.s32.totalorder %s111, 15
        %s113 = scalar_select %p112, %s111, 15
        %s114 = smul.addr %s113, 4
        %s115 = scalar_lea.vmem %s0, %s114
        %s116 = smul.u32 16, %s18
      $region16: #{sparse_ngcn_layer_forward.3} parent=11 // pred_fallthru
        _
      // Predicated region
      $region17: #{sparse_ngcn_layer_forward.3} parent=11 // pred_check
        %p117 = pneg %p67
      $region18: #{sparse_ngcn_layer_forward.3} parent=11 // pred_check_branch
        %119 = sbr.rel (%p117) target = $region20
      $region19: #{sparse_ngcn_layer_forward.3} parent=11 // pred_region
        _
      $region20: #{sparse_ngcn_layer_forward.3} parent=11 // pred_fallthru
        _
    $region12: #{sparse_ngcn_layer_forward.3} parent=5 // pred_fallthru
      _
    %p120 = scmp.lt.s32.totalorder %s8, 2
    // Predicated region
    $region21: #{sparse_ngcn_layer_forward.3} parent=5 // pred_check
      %p121 = pneg %p120
    $region22: #{sparse_ngcn_layer_forward.3} parent=5 // pred_check_branch
      %123 = sbr.rel (%p121) target = $region24
    $region23: #{sparse_ngcn_layer_forward.3} parent=5 // pred_region
      _
    $region24: #{sparse_ngcn_layer_forward.3} parent=5 // pred_fallthru
      _
    %p124 = scmp.le.s32.totalorder 1, %s8
    %p125 = scmp.lt.s32.totalorder %s8, 3
    %p126 = pnand %p124, %p125
    %p127 = pneg %p126
    // Predicated region
    $region25: #{sparse_ngcn_layer_forward.3} parent=5 // pred_check
      _
    $region26: #{sparse_ngcn_layer_forward.3} parent=5 // pred_check_branch
      %129 = sbr.rel (%p126) target = $region28
    $region27: #{sparse_ngcn_layer_forward.3} parent=5 // pred_region
      %s130 = ssub.s32 %s8, 1
      %s131 = smul.u32 16, %s18
      %p132 = scmp.lt.s32.totalorder %s131, 15
      %s133 = scalar_select %p132, %s131, 15
      %s134 = smul.addr %s133, 4
      %s135 = scalar_lea.vmem %s0, %s134
      %p136 = pneg %p46
      %p137 = pneg %p43
      %p138 = pneg %p67
      %p139 = pneg %p64
      %p140 = pneg %p93
      %p141 = pneg %p90
      %s142 = smul.u32 16, %s18
      %p143 = scmp.lt.s32.totalorder %s142, 15
      %s144 = scalar_select %p143, %s142, 15
      %s145 = smul.addr %s144, 4
      %s146 = scalar_lea.vmem %s2, %s145
      %s147 = smul.u32 16, %s18
      %p148 = scmp.lt.s32.totalorder %s147, 15
      %s149 = scalar_select %p148, %s147, 15
      %s150 = smul.addr %s149, 4
      %s151 = scalar_lea.vmem %s0, %s150
      %s152 = smul.u32 16, %s18
      %s153 = smul.u32 16, %s18
      %p154 = scmp.lt.s32.totalorder %s153, 15
      %s155 = scalar_select %p154, %s153, 15
      %s156 = smul.addr %s155, 4
      %s157 = scalar_lea.vmem %s2, %s156
      %s158 = smul.u32 16, %s18
      %p160 = scmp.eq.s32.totalorder %s17, 0
      %p161 = scmp.eq.s32.totalorder %s18, 0
      %p162 = pnand %p160, %p161
      %p163 = pneg %p162
      // Predicated region
      $region29: #{sparse_ngcn_layer_forward.3} parent=27 // pred_check
        _
      $region30: #{sparse_ngcn_layer_forward.3} parent=27 // pred_check_branch
        %165 = sbr.rel (%p162) target = $region32
      $region31: #{sparse_ngcn_layer_forward.3} parent=27 // pred_region
        %v166 = vld [vmem:[%s1] sm:$0xf]
        %v167 = vld [vmem:[%s1 + $0x4] sm:$0xf]
        %v168 = vld [vmem:[%s1 + $0x8] sm:$0xf]
        %v169 = vld [vmem:[%s1 + $0xc] sm:$0xf]
        %v170 = vld [vmem:[%s1 + $0x10] sm:$0xf]
        %v171 = vld [vmem:[%s1 + $0x14] sm:$0xf]
        %v172 = vld [vmem:[%s1 + $0x18] sm:$0xf]
        %v173 = vld [vmem:[%s1 + $0x1c] sm:$0xf]
        %v174 = vld [vmem:[%s1 + $0x20] sm:$0xf]
        %v175 = vld [vmem:[%s1 + $0x24] sm:$0xf]
        %v176 = vld [vmem:[%s1 + $0x28] sm:$0xf]
        %v177 = vld [vmem:[%s1 + $0x2c] sm:$0xf]
        %v178 = vld [vmem:[%s1 + $0x30] sm:$0xf]
        %v179 = vld [vmem:[%s1 + $0x34] sm:$0xf]
        %v180 = vld [vmem:[%s1 + $0x38] sm:$0xf]
        %v181 = vld [vmem:[%s1 + $0x3c] sm:$0xf]
        %v198 = vunpack.c.l.b16 %v166
        %v199 = vunpack.c.l.b16 %v167
        %v200 = vunpack.c.l.b16 %v168
        %v201 = vunpack.c.l.b16 %v169
        %v202 = vunpack.c.l.b16 %v170
        %v203 = vunpack.c.l.b16 %v171
        %v204 = vunpack.c.l.b16 %v172
        %v205 = vunpack.c.l.b16 %v173
        %v206 = vunpack.c.l.b16 %v174
        %v207 = vunpack.c.l.b16 %v175
        %v208 = vunpack.c.l.b16 %v176
        %v209 = vunpack.c.l.b16 %v177
        %v210 = vunpack.c.l.b16 %v178
        %v211 = vunpack.c.l.b16 %v179
        %v212 = vunpack.c.l.b16 %v180
        %v213 = vunpack.c.l.b16 %v181
        %v214 = vpack.c.b16 %v199, %v198
        %v215 = vpack.c.b16 %v201, %v200
        %v216 = vpack.c.b16 %v203, %v202
        %v217 = vpack.c.b16 %v205, %v204
        %v218 = vpack.c.b16 %v207, %v206
        %v219 = vpack.c.b16 %v209, %v208
        %v220 = vpack.c.b16 %v211, %v210
        %v221 = vpack.c.b16 %v213, %v212
        %230 = vst [vmem:[#allocation2] sm:$0xff] %v214
        %231 = vst [vmem:[#allocation2 + $0x8] sm:$0xff] %v215
        %232 = vst [vmem:[#allocation2 + $0x10] sm:$0xff] %v216
        %233 = vst [vmem:[#allocation2 + $0x18] sm:$0xff] %v217
        %234 = vst [vmem:[#allocation2 + $0x20] sm:$0xff] %v218
        %235 = vst [vmem:[#allocation2 + $0x28] sm:$0xff] %v219
        %236 = vst [vmem:[#allocation2 + $0x30] sm:$0xff] %v220
        %237 = vst [vmem:[#allocation2 + $0x38] sm:$0xff] %v221
      $region32: #{sparse_ngcn_layer_forward.3} parent=27 // pred_fallthru
        _
      %s238 = sand.u32 %s17, 1
      %s239 = smul.u32 %s238, 8
      %s240 = smul.addr %s239, 8
      %s241 = scalar_lea.vmem [#allocation2], %s240
      %v242 = vld [vmem:[%s241] sm:$0xff]
      %v243 = vld [vmem:[%s241 + $0x8] sm:$0xff]
      %v244 = vld [vmem:[%s241 + $0x10] sm:$0xff]
      %v245 = vld [vmem:[%s241 + $0x18] sm:$0xff]
      %v246 = vld [vmem:[%s241 + $0x20] sm:$0xff]
      %v247 = vld [vmem:[%s241 + $0x28] sm:$0xff]
      %v248 = vld [vmem:[%s241 + $0x30] sm:$0xff]
      %v249 = vld [vmem:[%s241 + $0x38] sm:$0xff]
      %v250 = vld [vmem:[%s151] sm:$0xf]
      %v251 = vld [vmem:[%s151 + $0x4] sm:$0xf]
      %v252 = vld [vmem:[%s151 + $0x8] sm:$0xf]
      %v253 = vld [vmem:[%s151 + $0xc] sm:$0xf]
      %v254 = vld [vmem:[%s151 + $0x10] sm:$0xf]
      %v255 = vld [vmem:[%s151 + $0x14] sm:$0xf]
      %v256 = vld [vmem:[%s151 + $0x18] sm:$0xf]
      %v257 = vld [vmem:[%s151 + $0x1c] sm:$0xf]
      %v258 = vld [vmem:[%s151 + $0x20] sm:$0xf]
      %v259 = vld [vmem:[%s151 + $0x24] sm:$0xf]
      %v260 = vld [vmem:[%s151 + $0x28] sm:$0xf]
      %v261 = vld [vmem:[%s151 + $0x2c] sm:$0xf]
      %v262 = vld [vmem:[%s151 + $0x30] sm:$0xf]
      %v263 = vld [vmem:[%s151 + $0x34] sm:$0xf]
      %v264 = vld [vmem:[%s151 + $0x38] sm:$0xf]
      %v265 = vld [vmem:[%s151 + $0x3c] sm:$0xf]
      %v282 = vunpack.c.l.b16 %v250
      %v283 = vunpack.c.l.b16 %v251
      %v284 = vunpack.c.l.b16 %v252
      %v285 = vunpack.c.l.b16 %v253
      %v286 = vunpack.c.l.b16 %v254
      %v287 = vunpack.c.l.b16 %v255
      %v288 = vunpack.c.l.b16 %v256
      %v289 = vunpack.c.l.b16 %v257
      %v290 = vunpack.c.l.b16 %v258
      %v291 = vunpack.c.l.b16 %v259
      %v292 = vunpack.c.l.b16 %v260
      %v293 = vunpack.c.l.b16 %v261
      %v294 = vunpack.c.l.b16 %v262
      %v295 = vunpack.c.l.b16 %v263
      %v296 = vunpack.c.l.b16 %v264
      %v297 = vunpack.c.l.b16 %v265
      %v298 = vpack.c.b16 %v283, %v282
      %v299 = vpack.c.b16 %v285, %v284
      %v300 = vpack.c.b16 %v287, %v286
      %v301 = vpack.c.b16 %v289, %v288
      %v302 = vpack.c.b16 %v291, %v290
      %v303 = vpack.c.b16 %v293, %v292
      %v304 = vpack.c.b16 %v295, %v294
      %v305 = vpack.c.b16 %v297, %v296
      %314 = vmatprep.subr.bf16.mxu0 0
      %315 = vmatpush1.bf16.msra.mxu0 %v242
      %316 = vmatprep.subr.bf16.mxu0 0
      %317 = vmatpush1.bf16.msra.mxu0 %v243
      %318 = vmatprep.subr.bf16.mxu0 0
      %319 = vmatpush1.bf16.msra.mxu0 %v244
      %320 = vmatprep.subr.bf16.mxu0 0
      %321 = vmatpush1.bf16.msra.mxu0 %v245
      %322 = vmatprep.subr.bf16.mxu0 0
      %323 = vmatpush1.bf16.msra.mxu0 %v246
      %324 = vmatprep.subr.bf16.mxu0 0
      %325 = vmatpush1.bf16.msra.mxu0 %v247
      %326 = vmatprep.subr.bf16.mxu0 0
      %327 = vmatpush1.bf16.msra.mxu0 %v248
      %328 = vmatprep.subr.bf16.mxu0 0
      %329 = vmatpush1.bf16.msra.mxu0 %v249
      %330 = vmatprep.subr.bf16.mxu0 0
      %331 = vmatpush1.bf16.msra.mxu0 0
      %332 = vmatprep.subr.bf16.mxu0 0
      %333 = vmatpush1.bf16.msra.mxu0 0
      %334 = vmatprep.subr.bf16.mxu0 0
      %335 = vmatpush1.bf16.msra.mxu0 0
      %336 = vmatprep.subr.bf16.mxu0 0
      %337 = vmatpush1.bf16.msra.mxu0 0
      %338 = vmatprep.subr.bf16.mxu0 0
      %339 = vmatpush1.bf16.msra.mxu0 0
      %340 = vmatprep.subr.bf16.mxu0 0
      %341 = vmatpush1.bf16.msra.mxu0 0
      %342 = vmatprep.subr.bf16.mxu0 0
      %343 = vmatpush1.bf16.msra.mxu0 0
      %344 = vmatprep.subr.bf16.mxu0 0
      %345 = vmatpush1.bf16.msra.mxu0 0
      %346 = vmatprep.mubr.bf16.mxu0 0
      %347 = vmatmul.mubr.bf16.gmra.mrb[0].mxu0 %v298
      %v348 = vpop.f32.mrb[0].mxu0
      %v349 = vadd.f32 0.0, %v348
      %v350 = vpop.f32.mrb[0].mxu0
      %v351 = vpop.f32.mrb[0].mxu0
      %v352 = vadd.f32 0.0, %v351
      %v353 = vpop.f32.mrb[0].mxu0
      %354 = vmatprep.mubr.bf16.mxu0 0
      %355 = vmatmul.mubr.bf16.gmra.mrb[0].mxu0 %v299
      %v356 = vpop.f32.mrb[0].mxu0
      %v357 = vadd.f32 0.0, %v356
      %v358 = vpop.f32.mrb[0].mxu0
      %v359 = vpop.f32.mrb[0].mxu0
      %v360 = vadd.f32 0.0, %v359
      %v361 = vpop.f32.mrb[0].mxu0
      %362 = vmatprep.mubr.bf16.mxu0 0
      %363 = vmatmul.mubr.bf16.gmra.mrb[0].mxu0 %v300
      %v364 = vpop.f32.mrb[0].mxu0
      %v365 = vadd.f32 0.0, %v364
      %v366 = vpop.f32.mrb[0].mxu0
      %v367 = vpop.f32.mrb[0].mxu0
      %v368 = vadd.f32 0.0, %v367
      %v369 = vpop.f32.mrb[0].mxu0
      %370 = vmatprep.mubr.bf16.mxu0 0
      %371 = vmatmul.mubr.bf16.gmra.mrb[0].mxu0 %v301
      %v372 = vpop.f32.mrb[0].mxu0
      %v373 = vadd.f32 0.0, %v372
      %v374 = vpop.f32.mrb[0].mxu0
      %v375 = vpop.f32.mrb[0].mxu0
      %v376 = vadd.f32 0.0, %v375
      %v377 = vpop.f32.mrb[0].mxu0
      %378 = vmatprep.mubr.bf16.mxu0 0
      %379 = vmatmul.mubr.bf16.gmra.mrb[0].mxu0 %v302
      %v380 = vpop.f32.mrb[0].mxu0
      %v381 = vadd.f32 0.0, %v380
      %v382 = vpop.f32.mrb[0].mxu0
      %v383 = vpop.f32.mrb[0].mxu0
      %v384 = vadd.f32 0.0, %v383
      %v385 = vpop.f32.mrb[0].mxu0
      %386 = vmatprep.mubr.bf16.mxu0 0
      %387 = vmatmul.mubr.bf16.gmra.mrb[0].mxu0 %v303
      %v388 = vpop.f32.mrb[0].mxu0
      %v389 = vadd.f32 0.0, %v388
      %v390 = vpop.f32.mrb[0].mxu0
      %v391 = vpop.f32.mrb[0].mxu0
      %v392 = vadd.f32 0.0, %v391
      %v393 = vpop.f32.mrb[0].mxu0
      %394 = vmatprep.mubr.bf16.mxu0 0
      %395 = vmatmul.mubr.bf16.gmra.mrb[0].mxu0 %v304
      %v396 = vpop.f32.mrb[0].mxu0
      %v397 = vadd.f32 0.0, %v396
      %v398 = vpop.f32.mrb[0].mxu0
      %v399 = vpop.f32.mrb[0].mxu0
      %v400 = vadd.f32 0.0, %v399
      %v401 = vpop.f32.mrb[0].mxu0
      %402 = vmatprep.mubr.bf16.mxu0 0
      %403 = vmatmul.mubr.bf16.gmra.mrb[0].mxu0 %v305
      %v404 = vpop.f32.mrb[0].mxu0
      %v405 = vadd.f32 0.0, %v404
      %v406 = vpop.f32.mrb[0].mxu0
      %v407 = vpop.f32.mrb[0].mxu0
      %v408 = vadd.f32 0.0, %v407
      %v409 = vpop.f32.mrb[0].mxu0
      %410 = vdwg.mxu0
      %v411 = vpack.c.bf16 %v352, %v349
      %v412 = vpack.c.bf16 %v360, %v357
      %v413 = vpack.c.bf16 %v368, %v365
      %v414 = vpack.c.bf16 %v376, %v373
      %v415 = vpack.c.bf16 %v384, %v381
      %v416 = vpack.c.bf16 %v392, %v389
      %v417 = vpack.c.bf16 %v400, %v397
      %v418 = vpack.c.bf16 %v408, %v405
      %s419 = smul.u32 %s18, 128
      %p420 = scmp.eq.s32.totalorder %s238, 0
      // Predicated region
      $region33: #{sparse_ngcn_layer_forward.3} parent=27 // pred_check
        %p421 = pneg %p420
      $region34: #{sparse_ngcn_layer_forward.3} parent=27 // pred_check_branch
        %423 = sbr.rel (%p421) target = $region36
      $region35: #{sparse_ngcn_layer_forward.3} parent=27 // pred_region
        %s424 = sshra.s32 %s419, 4
        %s425 = sand.u32 %s419, 15
        %s426 = sadd.s32 %s424, 8
        %s427 = smul.addr %s426, 8
        %s428 = scalar_lea.vmem [#allocation2], %s427
        %429 = vst [vmem:[%s428] sm:$0xff] %v411
        %430 = vst [vmem:[%s428 + $0x8] sm:$0xff] %v412
        %431 = vst [vmem:[%s428 + $0x10] sm:$0xff] %v413
        %432 = vst [vmem:[%s428 + $0x18] sm:$0xff] %v414
        %433 = vst [vmem:[%s428 + $0x20] sm:$0xff] %v415
        %434 = vst [vmem:[%s428 + $0x28] sm:$0xff] %v416
        %435 = vst [vmem:[%s428 + $0x30] sm:$0xff] %v417
        %436 = vst [vmem:[%s428 + $0x38] sm:$0xff] %v418
      $region36: #{sparse_ngcn_layer_forward.3} parent=27 // pred_fallthru
        _
      %p437 = scmp.eq.s32.totalorder %s238, 1
      // Predicated region
      $region37: #{sparse_ngcn_layer_forward.3} parent=27 // pred_check
        %p438 = pneg %p437
      $region38: #{sparse_ngcn_layer_forward.3} parent=27 // pred_check_branch
        %440 = sbr.rel (%p438) target = $region40
      $region39: #{sparse_ngcn_layer_forward.3} parent=27 // pred_region
        %s441 = sshra.s32 %s419, 4
        %s442 = sand.u32 %s419, 15
        %s443 = smul.addr %s441, 8
        %s444 = scalar_lea.vmem [#allocation2], %s443
        %445 = vst [vmem:[%s444] sm:$0xff] %v411
        %446 = vst [vmem:[%s444 + $0x8] sm:$0xff] %v412
        %447 = vst [vmem:[%s444 + $0x10] sm:$0xff] %v413
        %448 = vst [vmem:[%s444 + $0x18] sm:$0xff] %v414
        %449 = vst [vmem:[%s444 + $0x20] sm:$0xff] %v415
        %450 = vst [vmem:[%s444 + $0x28] sm:$0xff] %v416
        %451 = vst [vmem:[%s444 + $0x30] sm:$0xff] %v417
        %452 = vst [vmem:[%s444 + $0x38] sm:$0xff] %v418
      $region40: #{sparse_ngcn_layer_forward.3} parent=27 // pred_fallthru
        _
      %v461 = vunpack.c.l.b16 %v411
      %v462 = vunpack.c.h.b16 %v411
      %v463 = vunpack.c.l.b16 %v412
      %v464 = vunpack.c.h.b16 %v412
      %v465 = vunpack.c.l.b16 %v413
      %v466 = vunpack.c.h.b16 %v413
      %v467 = vunpack.c.l.b16 %v414
      %v468 = vunpack.c.h.b16 %v414
      %v469 = vunpack.c.l.b16 %v415
      %v470 = vunpack.c.h.b16 %v415
      %v471 = vunpack.c.l.b16 %v416
      %v472 = vunpack.c.h.b16 %v416
      %v473 = vunpack.c.l.b16 %v417
      %v474 = vunpack.c.h.b16 %v417
      %v475 = vunpack.c.l.b16 %v418
      %v476 = vunpack.c.h.b16 %v418
      %v477 = vpack.c.b16 %v461, %v461
      %v478 = vpack.c.b16 %v462, %v462
      %v479 = vpack.c.b16 %v463, %v463
      %v480 = vpack.c.b16 %v464, %v464
      %v481 = vpack.c.b16 %v465, %v465
      %v482 = vpack.c.b16 %v466, %v466
      %v483 = vpack.c.b16 %v467, %v467
      %v484 = vpack.c.b16 %v468, %v468
      %v485 = vpack.c.b16 %v469, %v469
      %v486 = vpack.c.b16 %v470, %v470
      %v487 = vpack.c.b16 %v471, %v471
      %v488 = vpack.c.b16 %v472, %v472
      %v489 = vpack.c.b16 %v473, %v473
      %v490 = vpack.c.b16 %v474, %v474
      %v491 = vpack.c.b16 %v475, %v475
      %v492 = vpack.c.b16 %v476, %v476
      %509 = vst [vmem:[%s157] sm:$0xf] %v477
      %510 = vst [vmem:[%s157 + $0x4] sm:$0xf] %v478
      %511 = vst [vmem:[%s157 + $0x8] sm:$0xf] %v479
      %512 = vst [vmem:[%s157 + $0xc] sm:$0xf] %v480
      %513 = vst [vmem:[%s157 + $0x10] sm:$0xf] %v481
      %514 = vst [vmem:[%s157 + $0x14] sm:$0xf] %v482
      %515 = vst [vmem:[%s157 + $0x18] sm:$0xf] %v483
      %516 = vst [vmem:[%s157 + $0x1c] sm:$0xf] %v484
      %517 = vst [vmem:[%s157 + $0x20] sm:$0xf] %v485
      %518 = vst [vmem:[%s157 + $0x24] sm:$0xf] %v486
      %519 = vst [vmem:[%s157 + $0x28] sm:$0xf] %v487
      %520 = vst [vmem:[%s157 + $0x2c] sm:$0xf] %v488
      %521 = vst [vmem:[%s157 + $0x30] sm:$0xf] %v489
      %522 = vst [vmem:[%s157 + $0x34] sm:$0xf] %v490
      %523 = vst [vmem:[%s157 + $0x38] sm:$0xf] %v491
      %524 = vst [vmem:[%s157 + $0x3c] sm:$0xf] %v492
      %s525 = smul.u32 16, %s18
      %p526 = scmp.lt.s32.totalorder %s525, 15
      %s527 = scalar_select %p526, %s525, 15
      %s528 = smul.addr %s527, 4
      %s529 = scalar_lea.vmem %s2, %s528
      // Predicated region
      $region41: #{sparse_ngcn_layer_forward.3} parent=27 // pred_check
        %p530 = pneg %p90
      $region42: #{sparse_ngcn_layer_forward.3} parent=27 // pred_check_branch
        %532 = sbr.rel (%p530) target = $region44
      $region43: #{sparse_ngcn_layer_forward.3} parent=27 // pred_region
        %s533 = smul.u32 16, %s18
      $region44: #{sparse_ngcn_layer_forward.3} parent=27 // pred_fallthru
        _
      // Predicated region
      $region45: #{sparse_ngcn_layer_forward.3} parent=27 // pred_check
        %p534 = pneg %p90
      $region46: #{sparse_ngcn_layer_forward.3} parent=27 // pred_check_branch
        %536 = sbr.rel (%p534) target = $region48
      $region47: #{sparse_ngcn_layer_forward.3} parent=27 // pred_region
        %s537 = smul.u32 16, %s18
        %p538 = scmp.lt.s32.totalorder %s537, 15
        %s539 = scalar_select %p538, %s537, 15
        %s540 = smul.addr %s539, 4
        %s541 = scalar_lea.vmem %s2, %s540
      $region48: #{sparse_ngcn_layer_forward.3} parent=27 // pred_fallthru
        _
    $region28: #{sparse_ngcn_layer_forward.3} parent=5 // pred_fallthru
      _
    %p542 = scmp.le.s32.totalorder 2, %s8
    // Predicated region
    $region49: #{sparse_ngcn_layer_forward.3} parent=5 // pred_check
      %p543 = pneg %p542
    $region50: #{sparse_ngcn_layer_forward.3} parent=5 // pred_check_branch
      %545 = sbr.rel (%p543) target = $region52
    $region51: #{sparse_ngcn_layer_forward.3} parent=5 // pred_region
      %s546 = ssub.s32 %s8, 2
    $region52: #{sparse_ngcn_layer_forward.3} parent=5 // pred_fallthru
      _
  $region6: #{sparse_ngcn_layer_forward.3} parent=0 // loop_footer
    %s12 = sadd.s32 1, %s8
  $region7: #{sparse_ngcn_layer_forward.3} parent=0 // loop_footer_branch
    %7 = sbr.rel target = $region3
  $region8: #{sparse_ngcn_layer_forward.3} parent=0 // loop_exit
    _

</llo_original>
